<compile_context>
chip_gen: v7x
topology: tpu7x:2x2x1
jax: 0.10.0
libtpu: 0.0.40
codegen_flags: <defaults>
</compile_context>

<pallas_src>
import functools

import jax
import jax.numpy as jnp
import numpy as np
from jax.experimental import pallas as pl
from jax.experimental.pallas import tpu as pltpu

MIN_SCALE_MC = 1e-3  # self.min_scale_monte_carlo


def _softplus(x):
    # matches torch.nn.functional.softplus(beta=1, threshold=20)
    return jnp.where(x > 20.0, x, jnp.log1p(jnp.exp(jnp.minimum(x, 20.0))))


def _round_up(n, m):
    return (n + m - 1) // m * m


def _hetxl_kernel(x_ref, wdiag_ref, bdiag_ref, wcls_ref, bcls_ref,
                  wfold_ref, bfold_ref, eps_d_ref, eps_r_ref, out_ref,
                  *, inv_temperature, rank):
    tb, sp, d = eps_d_ref.shape
    cp = wcls_ref.shape[-1]
    compute_dtype = wcls_ref.dtype

    x = x_ref[...]                                   # (tb, d) compute dtype
    w_cls = wcls_ref[...]                            # (d, cp) compute dtype

    # ---- per-batch-row linear layers, batched over the whole tile (MXU) ----
    pre_std = (jnp.dot(x, wdiag_ref[...], preferred_element_type=jnp.float32)
               + bdiag_ref[...])
    std = _softplus(pre_std) + MIN_SCALE_MC          # (tb, d) f32

    # base logits x @ Wcls^T + b_cls, hoisted out of the per-sample matmul
    base = (jnp.dot(x, w_cls, preferred_element_type=jnp.float32)
            + bcls_ref[...])                         # (tb, cp) f32

    # folded low-rank covariance factor in logit space: m[b, r*cp + c]
    m = (jnp.dot(x, wfold_ref[...], preferred_element_type=jnp.float32)
         + bfold_ref[...])                           # (tb, rank*cp) f32

    # ---- per-MC-sample terms ------------------------------------------------
    # diagonal noise pushed through the classifier: (tb*sp, d) @ (d, cp).
    # sp is a multiple of 8 so the merge (tb, sp, d) -> (tb*sp, d) keeps the
    # sublane tiling intact.
    diag = std[:, None, :] * eps_d_ref[...].astype(jnp.float32)   # (tb, sp, d) f32
    diag2 = diag.reshape(tb * sp, d).astype(compute_dtype)
    diag_logits = jnp.dot(diag2, w_cls,
                          preferred_element_type=jnp.float32).reshape(tb, sp, cp)

    logits = base[:, None, :] + diag_logits          # (tb, sp, cp) f32

    # low-rank noise contribution: sum_r eps_r[..., r] * m[:, r*cp:(r+1)*cp]
    # rank is small & static -> VPU broadcast-accumulate; lane slices of m are
    # 128-aligned because cp is a multiple of 128.
    eps_r = eps_r_ref[...].astype(jnp.float32)       # (tb, sp, rank)
    for r in range(rank):
        logits = logits + eps_r[:, :, r:r + 1] * m[:, None, r * cp:(r + 1) * cp]

    out_ref[...] = (logits * inv_temperature).astype(out_ref.dtype)


def hetxl_head_forward(features, params, eps_d, eps_r, *, temperature,
                       param_dtype=jnp.float32):
    B, D = features.shape
    S = eps_d.shape[1]
    R = eps_r.shape[2]
    C = params["w_cls"].shape[0]

    f32 = jnp.float32
    Cp = _round_up(C, 128)   # lane-dense classifier/output columns
    Sp = _round_up(S, 8)     # sublane-aligned MC-sample count

    w_cls = jnp.asarray(params["w_cls"], f32)                 # (C, D)
    b_cls = jnp.asarray(params["b_cls"], f32).reshape(1, C)

    # classifier, zero-padded to lane-dense Cp columns (sliced off at the end)
    w_cls_p = jnp.pad(w_cls.T, ((0, 0), (0, Cp - C)))         # (D, Cp)
    b_cls_p = jnp.pad(b_cls, ((0, 0), (0, Cp - C)))           # (1, Cp)

    # Fold the low-rank covariance layer through the classifier:
    #   w_fold[e, r, c] = sum_d W_cov[d*R + r, e] * W_cls[c, d]
    #   b_fold[r, c]    = sum_d b_cov[d*R + r]    * W_cls[c, d]
    # so the per-sample low-rank term is produced directly in logit space.
    w_cov3 = jnp.asarray(params["w_cov"], f32).reshape(D, R, D)   # [d, r, e]
    b_cov2 = jnp.asarray(params["b_cov"], f32).reshape(D, R)
    w_fold = jnp.einsum("dre,cd->erc", w_cov3, w_cls)         # (D, R, C)
    b_fold = jnp.einsum("dr,cd->rc", b_cov2, w_cls)           # (R, C)
    w_fold_p = jnp.pad(w_fold, ((0, 0), (0, 0), (0, Cp - C))).reshape(D, R * Cp)
    b_fold_p = jnp.pad(b_fold, ((0, 0), (0, Cp - C))).reshape(1, R * Cp)

    w_diag_t = jnp.asarray(params["w_diag"], f32).T           # (D, D)
    b_diag = jnp.asarray(params["b_diag"], f32).reshape(1, D)

    # MXU operands in the requested compute dtype (bf16 recommended on v6e/v7x:
    # full-rate MXU + half the VMEM/HBM traffic).  Biases stay f32 and are
    # added after the f32 accumulation.
    x = jnp.asarray(features, param_dtype)
    ed = jnp.asarray(eps_d, param_dtype)
    er = jnp.asarray(eps_r, param_dtype)
    w_cls_p = w_cls_p.astype(param_dtype)
    w_fold_p = w_fold_p.astype(param_dtype)
    w_diag_t = w_diag_t.astype(param_dtype)

    if Sp != S:
        ed = jnp.pad(ed, ((0, 0), (0, Sp - S), (0, 0)))
        er = jnp.pad(er, ((0, 0), (0, Sp - S), (0, 0)))

    # ---- batch-tile sizing under a VMEM budget (v7x only has 64 MiB) --------
    in_bytes = jnp.dtype(param_dtype).itemsize
    # double-buffered pipelined bytes per batch row (inputs + f32 output)
    per_row = 2 * in_bytes * (D + Sp * D + Sp * R) + 2 * 4 * Sp * Cp
    tile_b = min(256, max(8, int((24 << 20) // max(per_row, 1))))
    if B <= tile_b:
        tile_b, b_pad = B, B          # small problem: single grid step
    else:
        tile_b = max(8, (tile_b // 8) * 8)
        b_pad = _round_up(B, tile_b)

    if b_pad != B:
        x = jnp.pad(x, ((0, b_pad - B), (0, 0)))
        ed = jnp.pad(ed, ((0, b_pad - B), (0, 0), (0, 0)))
        er = jnp.pad(er, ((0, b_pad - B), (0, 0), (0, 0)))

    weight_bytes = (in_bytes * (D * D + D * Cp + D * R * Cp)
                    + 4 * (D + Cp + R * Cp))
    vmem_limit = int(min(max(2 * weight_bytes + tile_b * per_row + (4 << 20),
                             32 << 20), 48 << 20))

    kernel = functools.partial(_hetxl_kernel,
                               inv_temperature=1.0 / float(temperature),
                               rank=R)

    grid_spec = pltpu.PrefetchScalarGridSpec(
        num_scalar_prefetch=0,
        grid=(b_pad // tile_b,),
        in_specs=[
            pl.BlockSpec((tile_b, D), lambda i: (i, 0)),           # features tile
            # Constant-index weight blocks stay resident across the grid (the
            # pipeline only re-DMAs when the block index changes).
            # TODO(synk): pipeline_mode=pl.Buffered(1) would single-buffer them
            # and halve their VMEM footprint (relevant for large D*R*Cp on v7x).
            pl.BlockSpec((D, D), lambda i: (0, 0)),                # w_diag^T
            pl.BlockSpec((1, D), lambda i: (0, 0)),                # b_diag
            pl.BlockSpec((D, Cp), lambda i: (0, 0)),               # w_cls^T (padded)
            pl.BlockSpec((1, Cp), lambda i: (0, 0)),               # b_cls (padded)
            pl.BlockSpec((D, R * Cp), lambda i: (0, 0)),           # W_cov@W_cls fold
            pl.BlockSpec((1, R * Cp), lambda i: (0, 0)),           # b_cov fold
            pl.BlockSpec((tile_b, Sp, D), lambda i: (i, 0, 0)),    # eps_d tile
            pl.BlockSpec((tile_b, Sp, R), lambda i: (i, 0, 0)),    # eps_r tile
        ],
        out_specs=pl.BlockSpec((tile_b, Sp, Cp), lambda i: (i, 0, 0)),
    )

    out = pl.pallas_call(
        kernel,
        out_shape=jax.ShapeDtypeStruct((b_pad, Sp, Cp), jnp.float32),
        grid_spec=grid_spec,
        compiler_params=pltpu.CompilerParams(
            dimension_semantics=("parallel",),   # megacore-shard batch tiles (v7x)
            vmem_limit_bytes=vmem_limit),
    )(x, w_diag_t, b_diag, w_cls_p, b_cls_p, w_fold_p, b_fold_p, ed, er)

    return out[:B, :S, :C]


def init_params(key, D, R, C):
    ks = jax.random.split(key, 6)
    s = 0.1
    return {
        # nn.Linear(D, D*R): weight (D*R, D), bias (D*R,)
        "w_cov": jax.random.normal(ks[0], (D * R, D), jnp.float32) * s,
        "b_cov": jax.random.normal(ks[1], (D * R,), jnp.float32) * s,
        # nn.Linear(D, D): weight (D, D), bias (D,)
        "w_diag": jax.random.normal(ks[2], (D, D), jnp.float32) * s,
        "b_diag": jax.random.normal(ks[3], (D,), jnp.float32) * s,
        # classifier nn.Linear(D, C): weight (C, D), bias (C,)
        "w_cls": jax.random.normal(ks[4], (C, D), jnp.float32) * s,
        "b_cls": jax.random.normal(ks[5], (C,), jnp.float32) * s,
    }


def reference_forward(features, params, eps_d, eps_r, temperature):
    B, D = features.shape
    R = eps_r.shape[2]
    lr = (features @ params["w_cov"].T + params["b_cov"]).reshape(B, D, R)
    std = _softplus(features @ params["w_diag"].T + params["b_diag"]) + MIN_SCALE_MC
    diag_samples = std[:, None, :] * eps_d
    es = jnp.einsum("bdr,bsr->bsd", lr, eps_r)
    pre = features[:, None, :] + es + diag_samples
    logits = pre @ params["w_cls"].T + params["b_cls"]
    return logits / temperature


if __name__ == "__main__":
    B, D, R, S, C = 2, 32, 4, 8, 10   # batch, num_features, matrix_rank, num_mc_samples, classes
    temperature = 1.5

    key = jax.random.PRNGKey(0)
    k_feat, k_param, k_ed, k_er = jax.random.split(key, 4)

    features = jax.random.normal(k_feat, (B, D), jnp.float32)
    params = init_params(k_param, D, R, C)
    # torch.randn(B, S, D) / torch.randn(B, S, R) equivalents, generated host-side.
    eps_d = jax.random.normal(k_ed, (B, S, D), jnp.float32)
    eps_r = jax.random.normal(k_er, (B, S, R), jnp.float32)

    ref = reference_forward(features, params, eps_d, eps_r, temperature)

    # f32 path (tight tolerance)
    out_f32 = jax.block_until_ready(
        hetxl_head_forward(features, params, eps_d, eps_r,
                           temperature=temperature, param_dtype=jnp.float32))
    assert out_f32.shape == (B, S, C)
    np.testing.assert_allclose(np.asarray(out_f32), np.asarray(ref),
                               rtol=1e-4, atol=1e-4)

    # bf16 weights/eps path (f32 accumulation) — looser tolerance
    out_bf16 = jax.block_until_ready(
        hetxl_head_forward(features, params, eps_d, eps_r,
                           temperature=temperature, param_dtype=jnp.bfloat16))
    np.testing.assert_allclose(np.asarray(out_bf16), np.asarray(ref),
                               rtol=5e-2, atol=5e-2)

    print("KERNEL_OK")
</pallas_src>

<mosaic_0001>
module attributes {stable_mosaic.version = 11 : i64} {
  func.func @_hetxl_kernel(%arg0: i32, %arg1: memref<2x32xf32, #tpu.memory_space<vmem>>, %arg2: memref<32x32xf32, #tpu.memory_space<vmem>>, %arg3: memref<1x32xf32, #tpu.memory_space<vmem>>, %arg4: memref<32x128xf32, #tpu.memory_space<vmem>>, %arg5: memref<1x128xf32, #tpu.memory_space<vmem>>, %arg6: memref<32x512xf32, #tpu.memory_space<vmem>>, %arg7: memref<1x512xf32, #tpu.memory_space<vmem>>, %arg8: memref<2x8x32xf32, #tpu.memory_space<vmem>>, %arg9: memref<2x8x4xf32, #tpu.memory_space<vmem>>, %arg10: memref<2x8x128xf32, #tpu.memory_space<vmem>>) attributes {dimension_semantics = [#tpu.dimension_semantics<parallel>], iteration_bounds = array<i64: 1>, scalar_prefetch = 0 : i64, scratch_operands = 0 : i64, tpu.core_type = #tpu.core_type<tc>, window_params = [{transform_indices = @transform_0, window_bounds = array<i64: 2, 32>}, {pipeline_mode = #tpu.pipeline_mode<synchronous>, transform_indices = @transform_1, window_bounds = array<i64: 32, 32>}, {pipeline_mode = #tpu.pipeline_mode<synchronous>, transform_indices = @transform_2, window_bounds = array<i64: 1, 32>}, {pipeline_mode = #tpu.pipeline_mode<synchronous>, transform_indices = @transform_3, window_bounds = array<i64: 32, 128>}, {pipeline_mode = #tpu.pipeline_mode<synchronous>, transform_indices = @transform_4, window_bounds = array<i64: 1, 128>}, {pipeline_mode = #tpu.pipeline_mode<synchronous>, transform_indices = @transform_5, window_bounds = array<i64: 32, 512>}, {pipeline_mode = #tpu.pipeline_mode<synchronous>, transform_indices = @transform_6, window_bounds = array<i64: 1, 512>}, {transform_indices = @transform_7, window_bounds = array<i64: 2, 8, 32>}, {transform_indices = @transform_8, window_bounds = array<i64: 2, 8, 4>}, {transform_indices = @transform_9, window_bounds = array<i64: 2, 8, 128>}]} {
    %c0 = arith.constant 0 : index
    %c0_0 = arith.constant 0 : index
    %0 = vector.load %arg1[%c0, %c0_0] : memref<2x32xf32, #tpu.memory_space<vmem>>, vector<2x32xf32>
    %c0_1 = arith.constant 0 : index
    %c0_2 = arith.constant 0 : index
    %1 = vector.load %arg4[%c0_1, %c0_2] : memref<32x128xf32, #tpu.memory_space<vmem>>, vector<32x128xf32>
    %c0_3 = arith.constant 0 : index
    %c0_4 = arith.constant 0 : index
    %2 = vector.load %arg2[%c0_3, %c0_4] : memref<32x32xf32, #tpu.memory_space<vmem>>, vector<32x32xf32>
    %cst = arith.constant dense<0.000000e+00> : vector<2x32xf32>
    %3 = tpu.matmul %0, %2, %cst {dimension_numbers = #tpu.dot_dimension_numbers<[1], [0], [0], [1], [0, 0, 1, 1], [], []>} : vector<2x32xf32>, vector<32x32xf32>, vector<2x32xf32> -> vector<2x32xf32>
    %c0_5 = arith.constant 0 : index
    %c0_6 = arith.constant 0 : index
    %4 = vector.load %arg3[%c0_5, %c0_6] : memref<1x32xf32, #tpu.memory_space<vmem>>, vector<1x32xf32>
    %5 = vector.broadcast %4 : vector<1x32xf32> to vector<2x32xf32>
    %6 = arith.addf %3, %5 : vector<2x32xf32>
    %cst_7 = arith.constant 2.000000e+01 : f32
    %7 = vector.broadcast %cst_7 : f32 to vector<2x32xf32>
    %8 = arith.cmpf ogt, %6, %7 : vector<2x32xf32>
    %cst_8 = arith.constant 2.000000e+01 : f32
    %9 = vector.broadcast %cst_8 : f32 to vector<2x32xf32>
    %10 = arith.minimumf %6, %9 : vector<2x32xf32>
    %11 = math.exp %10 : vector<2x32xf32>
    %12 = math.log1p %11 : vector<2x32xf32>
    %13 = arith.select %8, %6, %12 : vector<2x32xi1>, vector<2x32xf32>
    %cst_9 = arith.constant 1.000000e-03 : f32
    %14 = vector.broadcast %cst_9 : f32 to vector<2x32xf32>
    %15 = arith.addf %13, %14 : vector<2x32xf32>
    %cst_10 = arith.constant dense<0.000000e+00> : vector<2x128xf32>
    %16 = tpu.matmul %0, %1, %cst_10 {dimension_numbers = #tpu.dot_dimension_numbers<[1], [0], [0], [1], [0, 0, 1, 1], [], []>} : vector<2x32xf32>, vector<32x128xf32>, vector<2x128xf32> -> vector<2x128xf32>
    %c0_11 = arith.constant 0 : index
    %c0_12 = arith.constant 0 : index
    %17 = vector.load %arg5[%c0_11, %c0_12] : memref<1x128xf32, #tpu.memory_space<vmem>>, vector<1x128xf32>
    %18 = vector.broadcast %17 : vector<1x128xf32> to vector<2x128xf32>
    %19 = arith.addf %16, %18 : vector<2x128xf32>
    %c0_13 = arith.constant 0 : index
    %c0_14 = arith.constant 0 : index
    %20 = vector.load %arg6[%c0_13, %c0_14] : memref<32x512xf32, #tpu.memory_space<vmem>>, vector<32x512xf32>
    %cst_15 = arith.constant dense<0.000000e+00> : vector<2x512xf32>
    %21 = tpu.matmul %0, %20, %cst_15 {dimension_numbers = #tpu.dot_dimension_numbers<[1], [0], [0], [1], [0, 0, 1, 1], [], []>} : vector<2x32xf32>, vector<32x512xf32>, vector<2x512xf32> -> vector<2x512xf32>
    %c0_16 = arith.constant 0 : index
    %c0_17 = arith.constant 0 : index
    %22 = vector.load %arg7[%c0_16, %c0_17] : memref<1x512xf32, #tpu.memory_space<vmem>>, vector<1x512xf32>
    %23 = vector.broadcast %22 : vector<1x512xf32> to vector<2x512xf32>
    %24 = arith.addf %21, %23 : vector<2x512xf32>
    %25 = vector.shape_cast %15 : vector<2x32xf32> to vector<2x1x32xf32>
    %c0_18 = arith.constant 0 : index
    %c0_19 = arith.constant 0 : index
    %c0_20 = arith.constant 0 : index
    %26 = vector.load %arg8[%c0_18, %c0_19, %c0_20] : memref<2x8x32xf32, #tpu.memory_space<vmem>>, vector<2x8x32xf32>
    %27 = vector.broadcast %25 : vector<2x1x32xf32> to vector<2x8x32xf32>
    %28 = arith.mulf %27, %26 : vector<2x8x32xf32>
    %29 = vector.shape_cast %28 : vector<2x8x32xf32> to vector<16x32xf32>
    %cst_21 = arith.constant dense<0.000000e+00> : vector<16x128xf32>
    %30 = tpu.matmul %29, %1, %cst_21 {dimension_numbers = #tpu.dot_dimension_numbers<[1], [0], [0], [1], [0, 0, 1, 1], [], []>} : vector<16x32xf32>, vector<32x128xf32>, vector<16x128xf32> -> vector<16x128xf32>
    %31 = vector.shape_cast %30 : vector<16x128xf32> to vector<2x8x128xf32>
    %32 = vector.shape_cast %19 : vector<2x128xf32> to vector<2x1x128xf32>
    %33 = vector.broadcast %32 : vector<2x1x128xf32> to vector<2x8x128xf32>
    %34 = arith.addf %33, %31 : vector<2x8x128xf32>
    %c0_22 = arith.constant 0 : index
    %c0_23 = arith.constant 0 : index
    %c0_24 = arith.constant 0 : index
    %35 = vector.load %arg9[%c0_22, %c0_23, %c0_24] : memref<2x8x4xf32, #tpu.memory_space<vmem>>, vector<2x8x4xf32>
    %36 = vector.extract_strided_slice %35 {offsets = [0, 0, 0], sizes = [2, 8, 1], strides = [1, 1, 1]} : vector<2x8x4xf32> to vector<2x8x1xf32>
    %37 = vector.extract_strided_slice %24 {offsets = [0, 0], sizes = [2, 128], strides = [1, 1]} : vector<2x512xf32> to vector<2x128xf32>
    %38 = vector.shape_cast %37 : vector<2x128xf32> to vector<2x1x128xf32>
    %39 = vector.broadcast %36 : vector<2x8x1xf32> to vector<2x8x128xf32>
    %40 = vector.broadcast %38 : vector<2x1x128xf32> to vector<2x8x128xf32>
    %41 = arith.mulf %39, %40 : vector<2x8x128xf32>
    %42 = arith.addf %34, %41 : vector<2x8x128xf32>
    %43 = vector.extract_strided_slice %35 {offsets = [0, 0, 1], sizes = [2, 8, 1], strides = [1, 1, 1]} : vector<2x8x4xf32> to vector<2x8x1xf32>
    %44 = vector.extract_strided_slice %24 {offsets = [0, 128], sizes = [2, 128], strides = [1, 1]} : vector<2x512xf32> to vector<2x128xf32>
    %45 = vector.shape_cast %44 : vector<2x128xf32> to vector<2x1x128xf32>
    %46 = vector.broadcast %43 : vector<2x8x1xf32> to vector<2x8x128xf32>
    %47 = vector.broadcast %45 : vector<2x1x128xf32> to vector<2x8x128xf32>
    %48 = arith.mulf %46, %47 : vector<2x8x128xf32>
    %49 = arith.addf %42, %48 : vector<2x8x128xf32>
    %50 = vector.extract_strided_slice %35 {offsets = [0, 0, 2], sizes = [2, 8, 1], strides = [1, 1, 1]} : vector<2x8x4xf32> to vector<2x8x1xf32>
    %51 = vector.extract_strided_slice %24 {offsets = [0, 256], sizes = [2, 128], strides = [1, 1]} : vector<2x512xf32> to vector<2x128xf32>
    %52 = vector.shape_cast %51 : vector<2x128xf32> to vector<2x1x128xf32>
    %53 = vector.broadcast %50 : vector<2x8x1xf32> to vector<2x8x128xf32>
    %54 = vector.broadcast %52 : vector<2x1x128xf32> to vector<2x8x128xf32>
    %55 = arith.mulf %53, %54 : vector<2x8x128xf32>
    %56 = arith.addf %49, %55 : vector<2x8x128xf32>
    %57 = vector.extract_strided_slice %35 {offsets = [0, 0, 3], sizes = [2, 8, 1], strides = [1, 1, 1]} : vector<2x8x4xf32> to vector<2x8x1xf32>
    %58 = vector.extract_strided_slice %24 {offsets = [0, 384], sizes = [2, 128], strides = [1, 1]} : vector<2x512xf32> to vector<2x128xf32>
    %59 = vector.shape_cast %58 : vector<2x128xf32> to vector<2x1x128xf32>
    %60 = vector.broadcast %57 : vector<2x8x1xf32> to vector<2x8x128xf32>
    %61 = vector.broadcast %59 : vector<2x1x128xf32> to vector<2x8x128xf32>
    %62 = arith.mulf %60, %61 : vector<2x8x128xf32>
    %63 = arith.addf %56, %62 : vector<2x8x128xf32>
    %cst_25 = arith.constant 0.666666686 : f32
    %64 = vector.broadcast %cst_25 : f32 to vector<2x8x128xf32>
    %65 = arith.mulf %63, %64 : vector<2x8x128xf32>
    %c0_26 = arith.constant 0 : index
    %c0_27 = arith.constant 0 : index
    %c0_28 = arith.constant 0 : index
    %66 = vector.load %arg10[%c0_26, %c0_27, %c0_28] : memref<2x8x128xf32, #tpu.memory_space<vmem>>, vector<2x8x128xf32>
    tpu.vector_store %arg10[%c0_26, %c0_27, %c0_28], %65 {strides = array<i32>} : memref<2x8x128xf32, #tpu.memory_space<vmem>>, vector<2x8x128xf32>,
    return
  }
  func.func @transform_0(%arg0: i32) -> (i32, i32) {
    %c0_i32 = arith.constant 0 : i32
    %c0_i32_0 = arith.constant 0 : i32
    return %arg0, %c0_i32 : i32, i32
  }
  func.func @transform_1(%arg0: i32) -> (i32, i32) {
    %c0_i32 = arith.constant 0 : i32
    %c0_i32_0 = arith.constant 0 : i32
    %c0_i32_1 = arith.constant 0 : i32
    return %c0_i32, %c0_i32_0 : i32, i32
  }
  func.func @transform_2(%arg0: i32) -> (i32, i32) {
    %c0_i32 = arith.constant 0 : i32
    %c0_i32_0 = arith.constant 0 : i32
    %c0_i32_1 = arith.constant 0 : i32
    return %c0_i32, %c0_i32_0 : i32, i32
  }
  func.func @transform_3(%arg0: i32) -> (i32, i32) {
    %c0_i32 = arith.constant 0 : i32
    %c0_i32_0 = arith.constant 0 : i32
    %c0_i32_1 = arith.constant 0 : i32
    return %c0_i32, %c0_i32_0 : i32, i32
  }
  func.func @transform_4(%arg0: i32) -> (i32, i32) {
    %c0_i32 = arith.constant 0 : i32
    %c0_i32_0 = arith.constant 0 : i32
    %c0_i32_1 = arith.constant 0 : i32
    return %c0_i32, %c0_i32_0 : i32, i32
  }
  func.func @transform_5(%arg0: i32) -> (i32, i32) {
    %c0_i32 = arith.constant 0 : i32
    %c0_i32_0 = arith.constant 0 : i32
    %c0_i32_1 = arith.constant 0 : i32
    return %c0_i32, %c0_i32_0 : i32, i32
  }
  func.func @transform_6(%arg0: i32) -> (i32, i32) {
    %c0_i32 = arith.constant 0 : i32
    %c0_i32_0 = arith.constant 0 : i32
    %c0_i32_1 = arith.constant 0 : i32
    return %c0_i32, %c0_i32_0 : i32, i32
  }
  func.func @transform_7(%arg0: i32) -> (i32, i32, i32) {
    %c0_i32 = arith.constant 0 : i32
    %c0_i32_0 = arith.constant 0 : i32
    %c0_i32_1 = arith.constant 0 : i32
    return %arg0, %c0_i32, %c0_i32_0 : i32, i32, i32
  }
  func.func @transform_8(%arg0: i32) -> (i32, i32, i32) {
    %c0_i32 = arith.constant 0 : i32
    %c0_i32_0 = arith.constant 0 : i32
    %c0_i32_1 = arith.constant 0 : i32
    return %arg0, %c0_i32, %c0_i32_0 : i32, i32, i32
  }
  func.func @transform_9(%arg0: i32) -> (i32, i32, i32) {
    %c0_i32 = arith.constant 0 : i32
    %c0_i32_0 = arith.constant 0 : i32
    %c0_i32_1 = arith.constant 0 : i32
    return %arg0, %c0_i32, %c0_i32_0 : i32, i32, i32
  }
}

</mosaic_0001>

<llo_original>
// kernel: tpu_custom_call.1
$region0: #{tpu_custom_call.1}
  #allocation0 [shape = 'u32[]', space=smem, size = 0x4, offset = 0x4, fixed_abs, tag = 'smem constant byte address 0x4 - core index']
  #allocation1 [shape = 'u32[144,128]{1,0:T(1,128)}', space=vmem, size = 0x12000, scoped, tag = 'internal scratch']
  %s0 = inlined_call_operand.vmem [shape: f32[2,32], index: 0, kind: input, shape index: {}]
  %s1 = inlined_call_operand.hbm [shape: f32[32,32], index: 1, kind: input, shape index: {}]
  %s2 = inlined_call_operand.hbm [shape: f32[1,32], index: 2, kind: input, shape index: {}]
  %s3 = inlined_call_operand.vmem [shape: f32[32,128], index: 3, kind: input, shape index: {}]
  %s4 = inlined_call_operand.hbm [shape: f32[1,128], index: 4, kind: input, shape index: {}]
  %s5 = inlined_call_operand.hbm [shape: f32[32,512], index: 5, kind: input, shape index: {}]
  %s6 = inlined_call_operand.hbm [shape: f32[1,512], index: 6, kind: input, shape index: {}]
  %s7 = inlined_call_operand.vmem [shape: f32[2,8,32], index: 7, kind: input, shape index: {}]
  %s8 = inlined_call_operand.vmem [shape: f32[2,8,4], index: 8, kind: input, shape index: {}]
  %s9 = inlined_call_operand.hbm [shape: f32[2,8,128], index: 9, kind: output, shape index: {}]
  %s10 = sld [smem:[#allocation0]]
  $region66: #{tpu_custom_call.1} parent=0
    _
  %s12 = ssub.s32 1, %s10
  %s13 = scalar_select 0, %s12, %s10
  $region1: #{tpu_custom_call.1} parent=0
    #allocation2 [shape = 'u8[16384]{0}', space=vmem, size = 0x4000, scoped, tag = 'input window, operand 1, single buffered']
    #allocation3 [shape = 's32[1]{0}', space=sflag, size = 0x4, scoped, tag = 'scoped memory for tpu_custom_call.1']
    #allocation4 [shape = 's32[1]{0}', space=sflag, size = 0x4, scoped, tag = 'scoped memory for tpu_custom_call.1']
    #allocation5 [shape = 'u8[512]{0}', space=vmem, size = 0x400, scoped, tag = 'input window, operand 2, single buffered']
    #allocation6 [shape = 's32[1]{0}', space=sflag, size = 0x4, scoped, tag = 'scoped memory for tpu_custom_call.1']
    #allocation7 [shape = 'u8[512]{0}', space=vmem, size = 0x400, scoped, tag = 'input window, operand 4, single buffered']
    #allocation8 [shape = 'u8[65536]{0}', space=vmem, size = 0x10000, scoped, tag = 'input window, operand 5, single buffered']
    #allocation9 [shape = 's32[1]{0}', space=sflag, size = 0x4, scoped, tag = 'scoped memory for tpu_custom_call.1']
    #allocation10 [shape = 'u8[2048]{0}', space=vmem, size = 0x800, scoped, tag = 'input window, operand 6, single buffered']
    #allocation11 [shape = 'u8[8192]{0}', space=vmem, size = 0x2000, scoped, tag = 'output window, operand 0, single buffered']
    %14 = vsyncpa [#allocation3], 0
    %15 = vsyncpa [#allocation6], 0
    %16 = vsyncpa [#allocation9], 0
    %17 = vsyncpa [#allocation4], 0
    // Predicated region
    $region2: #{tpu_custom_call.1} parent=1 // pred_check
      _
    $region3: #{tpu_custom_call.1} parent=1 // pred_check_branch
      %19 = sbr.rel (0) target = $region5
    $region4: #{tpu_custom_call.1} parent=1 // pred_region
      _
    $region5: #{tpu_custom_call.1} parent=1 // pred_fallthru
      _
    // Predicated region
    $region6: #{tpu_custom_call.1} parent=1 // pred_check
      _
    $region7: #{tpu_custom_call.1} parent=1 // pred_check_branch
      %21 = sbr.rel (0) target = $region9
    $region8: #{tpu_custom_call.1} parent=1 // pred_region
      %s23 = ssub.s32 512, 512
      %24 = vsyncadd [#allocation3], %s23
      %s25 = sshll.u32 [#allocation2], 4
      %s26 = int_to_ptr.vmem [resolvable:$true] %s25
      %31 = dma.hbm_to_vmem [thread:$0]  %s1, 512, %s26, [#allocation3], 128, 128, 8
    $region9: #{tpu_custom_call.1} parent=1 // pred_fallthru
      _
    // Predicated region
    $region10: #{tpu_custom_call.1} parent=1 // pred_check
      _
    $region11: #{tpu_custom_call.1} parent=1 // pred_check_branch
      %33 = sbr.rel (0) target = $region13
    $region12: #{tpu_custom_call.1} parent=1 // pred_region
      %s35 = ssub.s32 16, 16
      %36 = vsyncadd [#allocation6], %s35
      %s38 = sshll.u32 [#allocation5], 4
      %s39 = int_to_ptr.vmem [resolvable:$true] %s38
      %41 = dma.hbm_to_vmem [thread:$0]  %s2, 16, %s39, [#allocation6]
    $region13: #{tpu_custom_call.1} parent=1 // pred_fallthru
      _
    // Predicated region
    $region14: #{tpu_custom_call.1} parent=1 // pred_check
      _
    $region15: #{tpu_custom_call.1} parent=1 // pred_check_branch
      %43 = sbr.rel (0) target = $region17
    $region16: #{tpu_custom_call.1} parent=1 // pred_region
      _
    $region17: #{tpu_custom_call.1} parent=1 // pred_fallthru
      _
    // Predicated region
    $region18: #{tpu_custom_call.1} parent=1 // pred_check
      _
    $region19: #{tpu_custom_call.1} parent=1 // pred_check_branch
      %45 = sbr.rel (0) target = $region21
    $region20: #{tpu_custom_call.1} parent=1 // pred_region
      %s47 = ssub.s32 16, 16
      %48 = vsyncadd [#allocation6], %s47
      %s50 = sshll.u32 [#allocation7], 4
      %s51 = int_to_ptr.vmem [resolvable:$true] %s50
      %53 = dma.hbm_to_vmem [thread:$0]  %s4, 16, %s51, [#allocation6]
    $region21: #{tpu_custom_call.1} parent=1 // pred_fallthru
      _
    // Predicated region
    $region22: #{tpu_custom_call.1} parent=1 // pred_check
      _
    $region23: #{tpu_custom_call.1} parent=1 // pred_check_branch
      %55 = sbr.rel (0) target = $region25
    $region24: #{tpu_custom_call.1} parent=1 // pred_region
      %s57 = ssub.s32 2048, 2048
      %58 = vsyncadd [#allocation9], %s57
      %s59 = sshll.u32 [#allocation8], 4
      %s60 = int_to_ptr.vmem [resolvable:$true] %s59
      %65 = dma.hbm_to_vmem [thread:$0]  %s5, 2048, %s60, [#allocation9], 512, 512, 32
    $region25: #{tpu_custom_call.1} parent=1 // pred_fallthru
      _
    // Predicated region
    $region26: #{tpu_custom_call.1} parent=1 // pred_check
      _
    $region27: #{tpu_custom_call.1} parent=1 // pred_check_branch
      %67 = sbr.rel (0) target = $region29
    $region28: #{tpu_custom_call.1} parent=1 // pred_region
      %s69 = ssub.s32 64, 64
      %70 = vsyncadd [#allocation9], %s69
      %s72 = sshll.u32 [#allocation10], 4
      %s73 = int_to_ptr.vmem [resolvable:$true] %s72
      %75 = dma.hbm_to_vmem [thread:$0]  %s6, 64, %s73, [#allocation9]
    $region29: #{tpu_custom_call.1} parent=1 // pred_fallthru
      _
    // Predicated region
    $region30: #{tpu_custom_call.1} parent=1 // pred_check
      _
    $region31: #{tpu_custom_call.1} parent=1 // pred_check_branch
      %77 = sbr.rel (0) target = $region33
    $region32: #{tpu_custom_call.1} parent=1 // pred_region
      _
    $region33: #{tpu_custom_call.1} parent=1 // pred_fallthru
      _
    // Predicated region
    $region34: #{tpu_custom_call.1} parent=1 // pred_check
      _
    $region35: #{tpu_custom_call.1} parent=1 // pred_check_branch
      %79 = sbr.rel (0) target = $region37
    $region36: #{tpu_custom_call.1} parent=1 // pred_region
      _
    $region37: #{tpu_custom_call.1} parent=1 // pred_fallthru
      _
    // Predicated region
    $region38: #{tpu_custom_call.1} parent=1 // pred_check
      _
    $region39: #{tpu_custom_call.1} parent=1 // pred_check_branch
      %81 = sbr.rel (0) target = $region41
    $region40: #{tpu_custom_call.1} parent=1 // pred_region
      %82 = dma.done [#allocation3], 512
    $region41: #{tpu_custom_call.1} parent=1 // pred_fallthru
      _
    // Predicated region
    $region42: #{tpu_custom_call.1} parent=1 // pred_check
      _
    $region43: #{tpu_custom_call.1} parent=1 // pred_check_branch
      %84 = sbr.rel (0) target = $region45
    $region44: #{tpu_custom_call.1} parent=1 // pred_region
      %85 = dma.done [#allocation6], 16
    $region45: #{tpu_custom_call.1} parent=1 // pred_fallthru
      _
    // Predicated region
    $region46: #{tpu_custom_call.1} parent=1 // pred_check
      _
    $region47: #{tpu_custom_call.1} parent=1 // pred_check_branch
      %87 = sbr.rel (0) target = $region49
    $region48: #{tpu_custom_call.1} parent=1 // pred_region
      %88 = dma.done [#allocation6], 16
    $region49: #{tpu_custom_call.1} parent=1 // pred_fallthru
      _
    // Predicated region
    $region50: #{tpu_custom_call.1} parent=1 // pred_check
      _
    $region51: #{tpu_custom_call.1} parent=1 // pred_check_branch
      %90 = sbr.rel (0) target = $region53
    $region52: #{tpu_custom_call.1} parent=1 // pred_region
      %91 = dma.done [#allocation9], 2048
    $region53: #{tpu_custom_call.1} parent=1 // pred_fallthru
      _
    // Predicated region
    $region54: #{tpu_custom_call.1} parent=1 // pred_check
      _
    $region55: #{tpu_custom_call.1} parent=1 // pred_check_branch
      %93 = sbr.rel (0) target = $region57
    $region56: #{tpu_custom_call.1} parent=1 // pred_region
      %94 = dma.done [#allocation9], 64
    $region57: #{tpu_custom_call.1} parent=1 // pred_fallthru
      _
    %v95 = vld [vmem:[%s0] sm:$0x3]
    %v96 = vld [vmem:[%s3] sm:$0xff]
    %v97 = vld [vmem:[%s3 + $0x8] sm:$0xff]
    %v98 = vld [vmem:[%s3 + $0x10] sm:$0xff]
    %v99 = vld [vmem:[%s3 + $0x18] sm:$0xff]
    %v100 = vld [vmem:[#allocation2] sm:$0xff]
    %v101 = vld [vmem:[#allocation2 + $0x8] sm:$0xff]
    %v102 = vld [vmem:[#allocation2 + $0x10] sm:$0xff]
    %v103 = vld [vmem:[#allocation2 + $0x18] sm:$0xff]
    %v104 = vld [vmem:[#allocation5] sm:$0x1]
    %v106 = vlaneseq
    %v107 = vshrl.u32 %v106, 7
    %v108 = vsub.s32 0, %v107
    %v109 = vrot.slane %v104, %v108
    %vm111 = vcmask 261120
    %v113 = vsel %vm111, %v95, 0
    %115 = vmatprep.subr.mxu0 0.0
    %116 = vmatpush1.msra.mxu0 %v100
    %117 = vmatprep.subr.mxu0 0.0
    %118 = vmatpush1.msra.mxu0 %v101
    %119 = vmatprep.subr.mxu0 0.0
    %120 = vmatpush1.msra.mxu0 %v102
    %121 = vmatprep.subr.mxu0 0.0
    %122 = vmatpush1.msra.mxu0 %v103
    %123 = vmatprep.subr.mxu0 0.0
    %124 = vmatpush1.msra.mxu0 0.0
    %125 = vmatprep.subr.mxu0 0.0
    %126 = vmatpush1.msra.mxu0 0.0
    %127 = vmatprep.subr.mxu0 0.0
    %128 = vmatpush1.msra.mxu0 0.0
    %129 = vmatprep.subr.mxu0 0.0
    %130 = vmatpush1.msra.mxu0 0.0
    %131 = vmatprep.subr.mxu0 0.0
    %132 = vmatpush1.msra.mxu0 0.0
    %133 = vmatprep.subr.mxu0 0.0
    %134 = vmatpush1.msra.mxu0 0.0
    %135 = vmatprep.subr.mxu0 0.0
    %136 = vmatpush1.msra.mxu0 0.0
    %137 = vmatprep.subr.mxu0 0.0
    %138 = vmatpush1.msra.mxu0 0.0
    %139 = vmatprep.subr.mxu0 0.0
    %140 = vmatpush1.msra.mxu0 0.0
    %141 = vmatprep.subr.mxu0 0.0
    %142 = vmatpush1.msra.mxu0 0.0
    %143 = vmatprep.subr.mxu0 0.0
    %144 = vmatpush1.msra.mxu0 0.0
    %145 = vmatprep.subr.mxu0 0.0
    %146 = vmatpush1.msra.mxu0 0.0
    %147 = vmatprep.subr.mxu0 0.0
    %148 = vmatpush1.msra.mxu0 0.0
    %149 = vmatprep.subr.mxu0 0.0
    %150 = vmatpush1.msra.mxu0 0.0
    %151 = vmatprep.subr.mxu0 0.0
    %152 = vmatpush1.msra.mxu0 0.0
    %153 = vmatprep.subr.mxu0 0.0
    %154 = vmatpush1.msra.mxu0 0.0
    %155 = vmatprep.subr.mxu0 0.0
    %156 = vmatpush1.msra.mxu0 0.0
    %157 = vmatprep.subr.mxu0 0.0
    %158 = vmatpush1.msra.mxu0 0.0
    %159 = vmatprep.subr.mxu0 0.0
    %160 = vmatpush1.msra.mxu0 0.0
    %161 = vmatprep.subr.mxu0 0.0
    %162 = vmatpush1.msra.mxu0 0.0
    %163 = vmatprep.subr.mxu0 0.0
    %164 = vmatpush1.msra.mxu0 0.0
    %165 = vmatprep.subr.mxu0 0.0
    %166 = vmatpush1.msra.mxu0 0.0
    %167 = vmatprep.subr.mxu0 0.0
    %168 = vmatpush1.msra.mxu0 0.0
    %169 = vmatprep.subr.mxu0 0.0
    %170 = vmatpush1.msra.mxu0 0.0
    %171 = vmatprep.subr.mxu0 0.0
    %172 = vmatpush1.msra.mxu0 0.0
    %173 = vmatprep.subr.mxu0 0.0
    %174 = vmatpush1.msra.mxu0 0.0
    %175 = vmatprep.subr.mxu0 0.0
    %176 = vmatpush1.msra.mxu0 0.0
    %177 = vmatprep.subr.mxu0 0.0
    %178 = vmatpush1.msra.mxu0 0.0
    %179 = vmatprep.mubr.f32.mxu0 0.0
    %180 = vmatmul.mubr.f32.gmra.mrb[0].mxu0 %v113
    %v181 = vpop.f32.mrb[0].mxu0
    %v182 = vadd.f32 %v109, %v181
    %v183 = vpop.f32.mrb[0].mxu0
    %184 = vdwg.mxu0
    %vm185 = vcmp.gt.f32.partialorder %v182, 20.0
    %v186 = vmin.f32 %v182, 20.0
    %v187 = vmul.f32 %v186, 1.442695
    %v188 = vpow.pop %v187
    %v189 = vadd.f32 %v188, 1.0
    %v190 = vlog2.pop %v189
    %v191 = vmul.f32 %v190, 0.6931472
    %v192 = vmul.f32 -0.5, %v188
    %v193 = vadd.f32 %v192, 1.0
    %v194 = vmul.f32 %v193, %v188
    %v195 = vand.u32 2147483647, %v188
    %vm196 = vcmp.lt.f32.partialorder %v195, 0.0004427343
    %v197 = vsel %vm196, %v194, %v191
    %v198 = vsel %vm185, %v182, %v197
    %v199 = vadd.f32 %v198, 0.001
    %v200 = vld [vmem:[#allocation7] sm:$0x1]
    %v202 = vlaneseq
    %v203 = vshrl.u32 %v202, 7
    %v204 = vsub.s32 0, %v203
    %v205 = vrot.slane %v200, %v204
    %207 = vmatprep.subr.mxu0 0.0
    %208 = vmatpush1.msra.mxu0 %v96
    %209 = vmatprep.subr.mxu0 0.0
    %210 = vmatpush1.msra.mxu0 %v97
    %211 = vmatprep.subr.mxu0 0.0
    %212 = vmatpush1.msra.mxu0 %v98
    %213 = vmatprep.subr.mxu0 0.0
    %214 = vmatpush1.msra.mxu0 %v99
    %215 = vmatprep.subr.mxu0 0.0
    %216 = vmatpush1.msra.mxu0 0.0
    %217 = vmatprep.subr.mxu0 0.0
    %218 = vmatpush1.msra.mxu0 0.0
    %219 = vmatprep.subr.mxu0 0.0
    %220 = vmatpush1.msra.mxu0 0.0
    %221 = vmatprep.subr.mxu0 0.0
    %222 = vmatpush1.msra.mxu0 0.0
    %223 = vmatprep.subr.mxu0 0.0
    %224 = vmatpush1.msra.mxu0 0.0
    %225 = vmatprep.subr.mxu0 0.0
    %226 = vmatpush1.msra.mxu0 0.0
    %227 = vmatprep.subr.mxu0 0.0
    %228 = vmatpush1.msra.mxu0 0.0
    %229 = vmatprep.subr.mxu0 0.0
    %230 = vmatpush1.msra.mxu0 0.0
    %231 = vmatprep.subr.mxu0 0.0
    %232 = vmatpush1.msra.mxu0 0.0
    %233 = vmatprep.subr.mxu0 0.0
    %234 = vmatpush1.msra.mxu0 0.0
    %235 = vmatprep.subr.mxu0 0.0
    %236 = vmatpush1.msra.mxu0 0.0
    %237 = vmatprep.subr.mxu0 0.0
    %238 = vmatpush1.msra.mxu0 0.0
    %239 = vmatprep.subr.mxu0 0.0
    %240 = vmatpush1.msra.mxu0 0.0
    %241 = vmatprep.subr.mxu0 0.0
    %242 = vmatpush1.msra.mxu0 0.0
    %243 = vmatprep.subr.mxu0 0.0
    %244 = vmatpush1.msra.mxu0 0.0
    %245 = vmatprep.subr.mxu0 0.0
    %246 = vmatpush1.msra.mxu0 0.0
    %247 = vmatprep.subr.mxu0 0.0
    %248 = vmatpush1.msra.mxu0 0.0
    %249 = vmatprep.subr.mxu0 0.0
    %250 = vmatpush1.msra.mxu0 0.0
    %251 = vmatprep.subr.mxu0 0.0
    %252 = vmatpush1.msra.mxu0 0.0
    %253 = vmatprep.subr.mxu0 0.0
    %254 = vmatpush1.msra.mxu0 0.0
    %255 = vmatprep.subr.mxu0 0.0
    %256 = vmatpush1.msra.mxu0 0.0
    %257 = vmatprep.subr.mxu0 0.0
    %258 = vmatpush1.msra.mxu0 0.0
    %259 = vmatprep.subr.mxu0 0.0
    %260 = vmatpush1.msra.mxu0 0.0
    %261 = vmatprep.subr.mxu0 0.0
    %262 = vmatpush1.msra.mxu0 0.0
    %263 = vmatprep.subr.mxu0 0.0
    %264 = vmatpush1.msra.mxu0 0.0
    %265 = vmatprep.subr.mxu0 0.0
    %266 = vmatpush1.msra.mxu0 0.0
    %267 = vmatprep.subr.mxu0 0.0
    %268 = vmatpush1.msra.mxu0 0.0
    %269 = vmatprep.subr.mxu0 0.0
    %270 = vmatpush1.msra.mxu0 0.0
    %271 = vmatprep.mubr.f32.mxu0 0.0
    %272 = vmatmul.mubr.f32.gmra.mrb[0].mxu0 %v113
    %v273 = vpop.f32.mrb[0].mxu0
    %v274 = vadd.f32 %v205, %v273
    %v275 = vpop.f32.mrb[0].mxu0
    %276 = vdwg.mxu0
    %v277 = vld [vmem:[#allocation8] sm:$0xff]
    %v278 = vld [vmem:[#allocation8 + $0x8] sm:$0xff]
    %v279 = vld [vmem:[#allocation8 + $0x10] sm:$0xff]
    %v280 = vld [vmem:[#allocation8 + $0x18] sm:$0xff]
    %v281 = vld [vmem:[#allocation8 + $0x20] sm:$0xff]
    %v282 = vld [vmem:[#allocation8 + $0x28] sm:$0xff]
    %v283 = vld [vmem:[#allocation8 + $0x30] sm:$0xff]
    %v284 = vld [vmem:[#allocation8 + $0x38] sm:$0xff]
    %v285 = vld [vmem:[#allocation8 + $0x40] sm:$0xff]
    %v286 = vld [vmem:[#allocation8 + $0x48] sm:$0xff]
    %v287 = vld [vmem:[#allocation8 + $0x50] sm:$0xff]
    %v288 = vld [vmem:[#allocation8 + $0x58] sm:$0xff]
    %v289 = vld [vmem:[#allocation8 + $0x60] sm:$0xff]
    %v290 = vld [vmem:[#allocation8 + $0x68] sm:$0xff]
    %v291 = vld [vmem:[#allocation8 + $0x70] sm:$0xff]
    %v292 = vld [vmem:[#allocation8 + $0x78] sm:$0xff]
    %v293 = vld [vmem:[#allocation10] sm:$0xf]
    %v295 = vlaneseq
    %v296 = vshrl.u32 %v295, 7
    %v297 = vsub.s32 0, %v296
    %v298 = vrot.slane %v293, %v297
    %v299 = vlaneseq
    %v300 = vshrl.u32 %v299, 7
    %v301 = vsub.s32 1, %v300
    %v302 = vrot.slane %v293, %v301
    %v303 = vlaneseq
    %v304 = vshrl.u32 %v303, 7
    %v305 = vsub.s32 2, %v304
    %v306 = vrot.slane %v293, %v305
    %v307 = vlaneseq
    %v308 = vshrl.u32 %v307, 7
    %v309 = vsub.s32 3, %v308
    %v310 = vrot.slane %v293, %v309
    %315 = vmatprep.subr.mxu0 %v278
    %316 = vmatpush1.msra.mxu0 %v277
    %317 = vmatprep.subr.mxu0 %v282
    %318 = vmatpush1.msra.mxu0 %v281
    %319 = vmatprep.subr.mxu0 %v286
    %320 = vmatpush1.msra.mxu0 %v285
    %321 = vmatprep.subr.mxu0 %v290
    %322 = vmatpush1.msra.mxu0 %v289
    %323 = vmatprep.subr.mxu0 0.0
    %324 = vmatpush1.msra.mxu0 0.0
    %325 = vmatprep.subr.mxu0 0.0
    %326 = vmatpush1.msra.mxu0 0.0
    %327 = vmatprep.subr.mxu0 0.0
    %328 = vmatpush1.msra.mxu0 0.0
    %329 = vmatprep.subr.mxu0 0.0
    %330 = vmatpush1.msra.mxu0 0.0
    %331 = vmatprep.subr.mxu0 0.0
    %332 = vmatpush1.msra.mxu0 0.0
    %333 = vmatprep.subr.mxu0 0.0
    %334 = vmatpush1.msra.mxu0 0.0
    %335 = vmatprep.subr.mxu0 0.0
    %336 = vmatpush1.msra.mxu0 0.0
    %337 = vmatprep.subr.mxu0 0.0
    %338 = vmatpush1.msra.mxu0 0.0
    %339 = vmatprep.subr.mxu0 0.0
    %340 = vmatpush1.msra.mxu0 0.0
    %341 = vmatprep.subr.mxu0 0.0
    %342 = vmatpush1.msra.mxu0 0.0
    %343 = vmatprep.subr.mxu0 0.0
    %344 = vmatpush1.msra.mxu0 0.0
    %345 = vmatprep.subr.mxu0 0.0
    %346 = vmatpush1.msra.mxu0 0.0
    %347 = vmatprep.subr.mxu0 0.0
    %348 = vmatpush1.msra.mxu0 0.0
    %349 = vmatprep.subr.mxu0 0.0
    %350 = vmatpush1.msra.mxu0 0.0
    %351 = vmatprep.subr.mxu0 0.0
    %352 = vmatpush1.msra.mxu0 0.0
    %353 = vmatprep.subr.mxu0 0.0
    %354 = vmatpush1.msra.mxu0 0.0
    %355 = vmatprep.subr.mxu0 0.0
    %356 = vmatpush1.msra.mxu0 0.0
    %357 = vmatprep.subr.mxu0 0.0
    %358 = vmatpush1.msra.mxu0 0.0
    %359 = vmatprep.subr.mxu0 0.0
    %360 = vmatpush1.msra.mxu0 0.0
    %361 = vmatprep.subr.mxu0 0.0
    %362 = vmatpush1.msra.mxu0 0.0
    %363 = vmatprep.subr.mxu0 0.0
    %364 = vmatpush1.msra.mxu0 0.0
    %365 = vmatprep.subr.mxu0 0.0
    %366 = vmatpush1.msra.mxu0 0.0
    %367 = vmatprep.subr.mxu0 0.0
    %368 = vmatpush1.msra.mxu0 0.0
    %369 = vmatprep.subr.mxu0 0.0
    %370 = vmatpush1.msra.mxu0 0.0
    %371 = vmatprep.subr.mxu0 0.0
    %372 = vmatpush1.msra.mxu0 0.0
    %373 = vmatprep.subr.mxu0 0.0
    %374 = vmatpush1.msra.mxu0 0.0
    %375 = vmatprep.subr.mxu0 0.0
    %376 = vmatpush1.msra.mxu0 0.0
    %377 = vmatprep.subr.mxu0 0.0
    %378 = vmatpush1.msra.mxu0 0.0
    %379 = vmatprep.mubr.f32.mxu0 0.0
    %380 = vmatmul.mubr.f32.gmra.mrb[0].mxu0 %v113
    %v381 = vpop.f32.mrb[0].mxu0
    %v382 = vadd.f32 %v298, %v381
    %v383 = vpop.f32.mrb[0].mxu0
    %v384 = vadd.f32 %v302, %v383
    %385 = vdwg.mxu0
    %386 = vmatprep.subr.mxu0 %v280
    %387 = vmatpush1.msra.mxu0 %v279
    %388 = vmatprep.subr.mxu0 %v284
    %389 = vmatpush1.msra.mxu0 %v283
    %390 = vmatprep.subr.mxu0 %v288
    %391 = vmatpush1.msra.mxu0 %v287
    %392 = vmatprep.subr.mxu0 %v292
    %393 = vmatpush1.msra.mxu0 %v291
    %394 = vmatprep.subr.mxu0 0.0
    %395 = vmatpush1.msra.mxu0 0.0
    %396 = vmatprep.subr.mxu0 0.0
    %397 = vmatpush1.msra.mxu0 0.0
    %398 = vmatprep.subr.mxu0 0.0
    %399 = vmatpush1.msra.mxu0 0.0
    %400 = vmatprep.subr.mxu0 0.0
    %401 = vmatpush1.msra.mxu0 0.0
    %402 = vmatprep.subr.mxu0 0.0
    %403 = vmatpush1.msra.mxu0 0.0
    %404 = vmatprep.subr.mxu0 0.0
    %405 = vmatpush1.msra.mxu0 0.0
    %406 = vmatprep.subr.mxu0 0.0
    %407 = vmatpush1.msra.mxu0 0.0
    %408 = vmatprep.subr.mxu0 0.0
    %409 = vmatpush1.msra.mxu0 0.0
    %410 = vmatprep.subr.mxu0 0.0
    %411 = vmatpush1.msra.mxu0 0.0
    %412 = vmatprep.subr.mxu0 0.0
    %413 = vmatpush1.msra.mxu0 0.0
    %414 = vmatprep.subr.mxu0 0.0
    %415 = vmatpush1.msra.mxu0 0.0
    %416 = vmatprep.subr.mxu0 0.0
    %417 = vmatpush1.msra.mxu0 0.0
    %418 = vmatprep.subr.mxu0 0.0
    %419 = vmatpush1.msra.mxu0 0.0
    %420 = vmatprep.subr.mxu0 0.0
    %421 = vmatpush1.msra.mxu0 0.0
    %422 = vmatprep.subr.mxu0 0.0
    %423 = vmatpush1.msra.mxu0 0.0
    %424 = vmatprep.subr.mxu0 0.0
    %425 = vmatpush1.msra.mxu0 0.0
    %426 = vmatprep.subr.mxu0 0.0
    %427 = vmatpush1.msra.mxu0 0.0
    %428 = vmatprep.subr.mxu0 0.0
    %429 = vmatpush1.msra.mxu0 0.0
    %430 = vmatprep.subr.mxu0 0.0
    %431 = vmatpush1.msra.mxu0 0.0
    %432 = vmatprep.subr.mxu0 0.0
    %433 = vmatpush1.msra.mxu0 0.0
    %434 = vmatprep.subr.mxu0 0.0
    %435 = vmatpush1.msra.mxu0 0.0
    %436 = vmatprep.subr.mxu0 0.0
    %437 = vmatpush1.msra.mxu0 0.0
    %438 = vmatprep.subr.mxu0 0.0
    %439 = vmatpush1.msra.mxu0 0.0
    %440 = vmatprep.subr.mxu0 0.0
    %441 = vmatpush1.msra.mxu0 0.0
    %442 = vmatprep.subr.mxu0 0.0
    %443 = vmatpush1.msra.mxu0 0.0
    %444 = vmatprep.subr.mxu0 0.0
    %445 = vmatpush1.msra.mxu0 0.0
    %446 = vmatprep.subr.mxu0 0.0
    %447 = vmatpush1.msra.mxu0 0.0
    %448 = vmatprep.subr.mxu0 0.0
    %449 = vmatpush1.msra.mxu0 0.0
    %450 = vmatprep.mubr.f32.mxu0 0.0
    %451 = vmatmul.mubr.f32.gmra.mrb[0].mxu0 %v113
    %v452 = vpop.f32.mrb[0].mxu0
    %v453 = vadd.f32 %v306, %v452
    %v454 = vpop.f32.mrb[0].mxu0
    %v455 = vadd.f32 %v310, %v454
    %456 = vdwg.mxu0
    %v459 = vunpack.c.l.s4 1966171168
    %v460 = vunpack.c.0.s8 %v459
    %v461 = vlaneseq
    %v462 = vshrl.u32 %v461, 7
    %v463 = vsub.s32 %v460, %v462
    %v464 = vrot.slane %v199, %v463
    %v465 = vcombine.high %v464, %v464
    %v467 = vunpack.c.l.s4 1966171168
    %v468 = vunpack.c.0.s8 %v467
    %v469 = vlaneseq
    %v470 = vshrl.u32 %v469, 7
    %v471 = vsub.s32 %v468, %v470
    %v472 = vrot.slane %v464, %v471
    %v474 = vunpack.c.l.s4 1966171168
    %v475 = vunpack.c.0.s8 %v474
    %v476 = vlaneseq
    %v477 = vshrl.u32 %v476, 7
    %v478 = vsub.s32 %v475, %v477
    %v479 = vrot.slane %v465, %v478
    %v480 = vld [vmem:[%s7] sm:$0xff]
    %v481 = vld [vmem:[%s7 + $0x8] sm:$0xff]
    %v482 = vlaneseq
    %v483 = vshrl.u32 %v482, 7
    %v484 = vsub.s32 0, %v483
    %v485 = vrot.slane %v472, %v484
    %v486 = vlaneseq
    %v487 = vshrl.u32 %v486, 7
    %v488 = vsub.s32 0, %v487
    %v489 = vrot.slane %v479, %v488
    %v492 = vmul.f32 %v485, %v480
    %v493 = vmul.f32 %v489, %v481
    %v495 = vsel %vm111, %v492, 0
    %v498 = vsel %vm111, %v493, 0
    %500 = vmatprep.subr.mxu0 0.0
    %501 = vmatpush1.msra.mxu0 %v96
    %502 = vmatprep.subr.mxu0 0.0
    %503 = vmatpush1.msra.mxu0 %v97
    %504 = vmatprep.subr.mxu0 0.0
    %505 = vmatpush1.msra.mxu0 %v98
    %506 = vmatprep.subr.mxu0 0.0
    %507 = vmatpush1.msra.mxu0 %v99
    %508 = vmatprep.subr.mxu0 0.0
    %509 = vmatpush1.msra.mxu0 0.0
    %510 = vmatprep.subr.mxu0 0.0
    %511 = vmatpush1.msra.mxu0 0.0
    %512 = vmatprep.subr.mxu0 0.0
    %513 = vmatpush1.msra.mxu0 0.0
    %514 = vmatprep.subr.mxu0 0.0
    %515 = vmatpush1.msra.mxu0 0.0
    %516 = vmatprep.subr.mxu0 0.0
    %517 = vmatpush1.msra.mxu0 0.0
    %518 = vmatprep.subr.mxu0 0.0
    %519 = vmatpush1.msra.mxu0 0.0
    %520 = vmatprep.subr.mxu0 0.0
    %521 = vmatpush1.msra.mxu0 0.0
    %522 = vmatprep.subr.mxu0 0.0
    %523 = vmatpush1.msra.mxu0 0.0
    %524 = vmatprep.subr.mxu0 0.0
    %525 = vmatpush1.msra.mxu0 0.0
    %526 = vmatprep.subr.mxu0 0.0
    %527 = vmatpush1.msra.mxu0 0.0
    %528 = vmatprep.subr.mxu0 0.0
    %529 = vmatpush1.msra.mxu0 0.0
    %530 = vmatprep.subr.mxu0 0.0
    %531 = vmatpush1.msra.mxu0 0.0
    %532 = vmatprep.subr.mxu0 0.0
    %533 = vmatpush1.msra.mxu0 0.0
    %534 = vmatprep.subr.mxu0 0.0
    %535 = vmatpush1.msra.mxu0 0.0
    %536 = vmatprep.subr.mxu0 0.0
    %537 = vmatpush1.msra.mxu0 0.0
    %538 = vmatprep.subr.mxu0 0.0
    %539 = vmatpush1.msra.mxu0 0.0
    %540 = vmatprep.subr.mxu0 0.0
    %541 = vmatpush1.msra.mxu0 0.0
    %542 = vmatprep.subr.mxu0 0.0
    %543 = vmatpush1.msra.mxu0 0.0
    %544 = vmatprep.subr.mxu0 0.0
    %545 = vmatpush1.msra.mxu0 0.0
    %546 = vmatprep.subr.mxu0 0.0
    %547 = vmatpush1.msra.mxu0 0.0
    %548 = vmatprep.subr.mxu0 0.0
    %549 = vmatpush1.msra.mxu0 0.0
    %550 = vmatprep.subr.mxu0 0.0
    %551 = vmatpush1.msra.mxu0 0.0
    %552 = vmatprep.subr.mxu0 0.0
    %553 = vmatpush1.msra.mxu0 0.0
    %554 = vmatprep.subr.mxu0 0.0
    %555 = vmatpush1.msra.mxu0 0.0
    %556 = vmatprep.subr.mxu0 0.0
    %557 = vmatpush1.msra.mxu0 0.0
    %558 = vmatprep.subr.mxu0 0.0
    %559 = vmatpush1.msra.mxu0 0.0
    %560 = vmatprep.subr.mxu0 0.0
    %561 = vmatpush1.msra.mxu0 0.0
    %562 = vmatprep.subr.mxu0 0.0
    %563 = vmatpush1.msra.mxu0 0.0
    %564 = vmatprep.mubr.f32.mxu0 0.0
    %565 = vmatmul.mubr.f32.gmra.mrb[0].mxu0 %v495
    %v566 = vpop.f32.mrb[0].mxu0
    %v567 = vadd.f32 0.0, %v566
    %v568 = vpop.f32.mrb[0].mxu0
    %569 = vmatprep.mubr.f32.mxu0 0.0
    %570 = vmatmul.mubr.f32.gmra.mrb[0].mxu0 %v498
    %v571 = vpop.f32.mrb[0].mxu0
    %v572 = vadd.f32 0.0, %v571
    %v573 = vpop.f32.mrb[0].mxu0
    %574 = vdwg.mxu0
    %v577 = vunpack.c.l.s4 1966171168
    %v578 = vunpack.c.0.s8 %v577
    %v579 = vlaneseq
    %v580 = vshrl.u32 %v579, 7
    %v581 = vsub.s32 %v578, %v580
    %v582 = vrot.slane %v274, %v581
    %v583 = vcombine.high %v582, %v582
    %v585 = vunpack.c.l.s4 1966171168
    %v586 = vunpack.c.0.s8 %v585
    %v587 = vlaneseq
    %v588 = vshrl.u32 %v587, 7
    %v589 = vsub.s32 %v586, %v588
    %v590 = vrot.slane %v582, %v589
    %v592 = vunpack.c.l.s4 1966171168
    %v593 = vunpack.c.0.s8 %v592
    %v594 = vlaneseq
    %v595 = vshrl.u32 %v594, 7
    %v596 = vsub.s32 %v593, %v595
    %v597 = vrot.slane %v583, %v596
    %v598 = vlaneseq
    %v599 = vshrl.u32 %v598, 7
    %v600 = vsub.s32 0, %v599
    %v601 = vrot.slane %v590, %v600
    %v602 = vlaneseq
    %v603 = vshrl.u32 %v602, 7
    %v604 = vsub.s32 0, %v603
    %v605 = vrot.slane %v597, %v604
    %v608 = vadd.f32 %v601, %v567
    %v609 = vadd.f32 %v605, %v572
    %v610 = vld [vmem:[%s8] sm:$0xff]
    %v611 = vld [vmem:[%s8 + $0x8] sm:$0xff]
    %v614 = vunpack.c.l.s4 1966171168
    %v615 = vunpack.c.0.s8 %v614
    %v616 = vlaneseq
    %v617 = vshrl.u32 %v616, 7
    %v618 = vsub.s32 %v615, %v617
    %v619 = vrot.slane %v382, %v618
    %v620 = vcombine.high %v619, %v619
    %v622 = vunpack.c.l.s4 1966171168
    %v623 = vunpack.c.0.s8 %v622
    %v624 = vlaneseq
    %v625 = vshrl.u32 %v624, 7
    %v626 = vsub.s32 %v623, %v625
    %v627 = vrot.slane %v619, %v626
    %v629 = vunpack.c.l.s4 1966171168
    %v630 = vunpack.c.0.s8 %v629
    %v631 = vlaneseq
    %v632 = vshrl.u32 %v631, 7
    %v633 = vsub.s32 %v630, %v632
    %v634 = vrot.slane %v620, %v633
    %636 = vset.pattern.permute.xlu0 0
    %637 = vperm.xlu0 %636, %v610
    %v638 = vpop.permute.xlu0 %637
    %641 = vset.pattern.permute.xlu0 0
    %642 = vperm.xlu0 %641, %v611
    %v643 = vpop.permute.xlu0 %642
    %v645 = vlaneseq
    %v646 = vshrl.u32 %v645, 7
    %v647 = vsub.s32 0, %v646
    %v648 = vrot.slane %v627, %v647
    %v649 = vlaneseq
    %v650 = vshrl.u32 %v649, 7
    %v651 = vsub.s32 0, %v650
    %v652 = vrot.slane %v634, %v651
    %v655 = vmul.f32 %v638, %v648
    %v656 = vmul.f32 %v643, %v652
    %v657 = vadd.f32 %v608, %v655
    %v658 = vadd.f32 %v609, %v656
    %v661 = vunpack.c.l.s4 1966171168
    %v662 = vunpack.c.0.s8 %v661
    %v663 = vlaneseq
    %v664 = vshrl.u32 %v663, 7
    %v665 = vsub.s32 %v662, %v664
    %v666 = vrot.slane %v384, %v665
    %v667 = vcombine.high %v666, %v666
    %v669 = vunpack.c.l.s4 1966171168
    %v670 = vunpack.c.0.s8 %v669
    %v671 = vlaneseq
    %v672 = vshrl.u32 %v671, 7
    %v673 = vsub.s32 %v670, %v672
    %v674 = vrot.slane %v666, %v673
    %v676 = vunpack.c.l.s4 1966171168
    %v677 = vunpack.c.0.s8 %v676
    %v678 = vlaneseq
    %v679 = vshrl.u32 %v678, 7
    %v680 = vsub.s32 %v677, %v679
    %v681 = vrot.slane %v667, %v680
    %682 = vset.pattern.permute.xlu0 1
    %683 = vperm.xlu0 %682, %v610
    %v684 = vpop.permute.xlu0 %683
    %686 = vset.pattern.permute.xlu0 1
    %687 = vperm.xlu0 %686, %v611
    %v688 = vpop.permute.xlu0 %687
    %v690 = vlaneseq
    %v691 = vshrl.u32 %v690, 7
    %v692 = vsub.s32 0, %v691
    %v693 = vrot.slane %v674, %v692
    %v694 = vlaneseq
    %v695 = vshrl.u32 %v694, 7
    %v696 = vsub.s32 0, %v695
    %v697 = vrot.slane %v681, %v696
    %v700 = vmul.f32 %v684, %v693
    %v701 = vmul.f32 %v688, %v697
    %v702 = vadd.f32 %v657, %v700
    %v703 = vadd.f32 %v658, %v701
    %v706 = vunpack.c.l.s4 1966171168
    %v707 = vunpack.c.0.s8 %v706
    %v708 = vlaneseq
    %v709 = vshrl.u32 %v708, 7
    %v710 = vsub.s32 %v707, %v709
    %v711 = vrot.slane %v453, %v710
    %v712 = vcombine.high %v711, %v711
    %v714 = vunpack.c.l.s4 1966171168
    %v715 = vunpack.c.0.s8 %v714
    %v716 = vlaneseq
    %v717 = vshrl.u32 %v716, 7
    %v718 = vsub.s32 %v715, %v717
    %v719 = vrot.slane %v711, %v718
    %v721 = vunpack.c.l.s4 1966171168
    %v722 = vunpack.c.0.s8 %v721
    %v723 = vlaneseq
    %v724 = vshrl.u32 %v723, 7
    %v725 = vsub.s32 %v722, %v724
    %v726 = vrot.slane %v712, %v725
    %727 = vset.pattern.permute.xlu0 2
    %728 = vperm.xlu0 %727, %v610
    %v729 = vpop.permute.xlu0 %728
    %731 = vset.pattern.permute.xlu0 2
    %732 = vperm.xlu0 %731, %v611
    %v733 = vpop.permute.xlu0 %732
    %v735 = vlaneseq
    %v736 = vshrl.u32 %v735, 7
    %v737 = vsub.s32 0, %v736
    %v738 = vrot.slane %v719, %v737
    %v739 = vlaneseq
    %v740 = vshrl.u32 %v739, 7
    %v741 = vsub.s32 0, %v740
    %v742 = vrot.slane %v726, %v741
    %v745 = vmul.f32 %v729, %v738
    %v746 = vmul.f32 %v733, %v742
    %v747 = vadd.f32 %v702, %v745
    %v748 = vadd.f32 %v703, %v746
    %v751 = vunpack.c.l.s4 1966171168
    %v752 = vunpack.c.0.s8 %v751
    %v753 = vlaneseq
    %v754 = vshrl.u32 %v753, 7
    %v755 = vsub.s32 %v752, %v754
    %v756 = vrot.slane %v455, %v755
    %v757 = vcombine.high %v756, %v756
    %v759 = vunpack.c.l.s4 1966171168
    %v760 = vunpack.c.0.s8 %v759
    %v761 = vlaneseq
    %v762 = vshrl.u32 %v761, 7
    %v763 = vsub.s32 %v760, %v762
    %v764 = vrot.slane %v756, %v763
    %v766 = vunpack.c.l.s4 1966171168
    %v767 = vunpack.c.0.s8 %v766
    %v768 = vlaneseq
    %v769 = vshrl.u32 %v768, 7
    %v770 = vsub.s32 %v767, %v769
    %v771 = vrot.slane %v757, %v770
    %772 = vset.pattern.permute.xlu0 3
    %773 = vperm.xlu0 %772, %v610
    %v774 = vpop.permute.xlu0 %773
    %776 = vset.pattern.permute.xlu0 3
    %777 = vperm.xlu0 %776, %v611
    %v778 = vpop.permute.xlu0 %777
    %v780 = vlaneseq
    %v781 = vshrl.u32 %v780, 7
    %v782 = vsub.s32 0, %v781
    %v783 = vrot.slane %v764, %v782
    %v784 = vlaneseq
    %v785 = vshrl.u32 %v784, 7
    %v786 = vsub.s32 0, %v785
    %v787 = vrot.slane %v771, %v786
    %v790 = vmul.f32 %v774, %v783
    %v791 = vmul.f32 %v778, %v787
    %v792 = vadd.f32 %v747, %v790
    %v793 = vadd.f32 %v748, %v791
    %v794 = vmul.f32 %v792, 0.6666667
    %v795 = vmul.f32 %v793, 0.6666667
    %796 = vst [vmem:[#allocation11] sm:$0xff] %v794
    %797 = vst [vmem:[#allocation11 + $0x8] sm:$0xff] %v795
    // Predicated region
    $region58: #{tpu_custom_call.1} parent=1 // pred_check
      _
    $region59: #{tpu_custom_call.1} parent=1 // pred_check_branch
      %799 = sbr.rel (0) target = $region61
    $region60: #{tpu_custom_call.1} parent=1 // pred_region
      %s801 = ssub.s32 256, 256
      %802 = vsyncadd [#allocation4], %s801
      %s803 = sshll.u32 [#allocation11], 4
      %s804 = int_to_ptr.vmem [resolvable:$true] %s803
      %809 = dma.vmem_to_hbm [thread:$0]  %s804, 256, %s9, [#allocation4], 128, 128, 8
    $region61: #{tpu_custom_call.1} parent=1 // pred_fallthru
      _
    // Predicated region
    $region62: #{tpu_custom_call.1} parent=1 // pred_check
      _
    $region63: #{tpu_custom_call.1} parent=1 // pred_check_branch
      %811 = sbr.rel (0) target = $region65
    $region64: #{tpu_custom_call.1} parent=1 // pred_region
      %812 = dma.done [#allocation4], 256
    $region65: #{tpu_custom_call.1} parent=1 // pred_fallthru
      _
    %813 = vsyncpa [#allocation3], 1
    %814 = vsyncpa [#allocation6], 1
    %815 = vsyncpa [#allocation9], 1
    %816 = vsyncpa [#allocation4], 1

</llo_original>
